<compile_context>
chip_gen: v7x
topology: tpu7x:2x2x1
jax: 0.10.0
libtpu: 0.0.40
codegen_flags: <defaults>
</compile_context>

<pallas_src>
import functools
import math

import jax
import jax.numpy as jnp
from jax.experimental import pallas as pl
from jax.experimental.pallas import tpu as pltpu

_MASK_VALUE = -0.7 * float(jnp.finfo(jnp.float32).max)  # large finite negative (NaN-safe)
_VMEM_LIMIT = 32 * 1024 * 1024


# ---------------------------------------------------------------------------
# Kernel 1: fused QKV projection
#   [q | k | v] = x @ [Wq | Wk | Wv] + [bq | bk | bv]
# One wide MXU matmul per (row tile, reduction tile) step with an f32
# accumulator; epilogue adds bias, folds the 1/sqrt(Kd) scale into q, casts to
# the MXU dtype and writes q/k/v as three separate outputs.
# ---------------------------------------------------------------------------
def _qkv_proj_kernel(x_ref, w_ref, b_ref, q_ref, k_ref, v_ref, acc_ref, *, kd, scale):
    kstep = pl.program_id(2)

    @pl.when(kstep == 0)
    def _init():
        acc_ref[...] = jnp.zeros_like(acc_ref)

    acc_ref[...] += jnp.dot(x_ref[...], w_ref[...],
                            preferred_element_type=jnp.float32)

    @pl.when(kstep == pl.num_programs(2) - 1)
    def _finalize():
        acc = acc_ref[...] + b_ref[...].astype(jnp.float32)
        # Slices happen once per row tile (in VMEM), not per reduction step.
        q_ref[...] = (acc[:, :kd] * scale).astype(q_ref.dtype)
        k_ref[...] = acc[:, kd:2 * kd].astype(k_ref.dtype)
        v_ref[...] = acc[:, 2 * kd:].astype(v_ref.dtype)


def _qkv_projection(x, w_qkv, b_qkv, *, kd, scale, out_dtype, tr, td):
    B, S, D = x.shape
    F = w_qkv.shape[1]
    d_model = F - 2 * kd
    kernel = functools.partial(_qkv_proj_kernel, kd=kd, scale=scale)
    return pl.pallas_call(
        kernel,
        out_shape=(
            jax.ShapeDtypeStruct((B, S, kd), out_dtype),       # q (pre-scaled)
            jax.ShapeDtypeStruct((B, S, kd), out_dtype),       # k
            jax.ShapeDtypeStruct((B, S, d_model), out_dtype),  # v
        ),
        grid_spec=pltpu.PrefetchScalarGridSpec(
            num_scalar_prefetch=0,
            grid=(B, S // tr, D // td),
            in_specs=[
                pl.BlockSpec((None, tr, td), lambda b, r, k: (b, r, k)),
                # Reduction-tiled weight: (td, F) per step, double-buffered so
                # the DMA pipelines behind the matmul.  For very wide fused
                # projections (huge F) also tile F into lane-dense N blocks.
                pl.BlockSpec((td, F), lambda b, r, k: (k, 0)),
                pl.BlockSpec((1, F), lambda b, r, k: (0, 0)),
            ],
            out_specs=[
                pl.BlockSpec((None, tr, kd), lambda b, r, k: (b, r, 0)),
                pl.BlockSpec((None, tr, kd), lambda b, r, k: (b, r, 0)),
                pl.BlockSpec((None, tr, d_model), lambda b, r, k: (b, r, 0)),
            ],
            scratch_shapes=[pltpu.VMEM((tr, F), jnp.float32)],
        ),
        compiler_params=pltpu.CompilerParams(
            dimension_semantics=("parallel", "parallel", "arbitrary"),
            vmem_limit_bytes=_VMEM_LIMIT),
    )(x, w_qkv, b_qkv)


# ---------------------------------------------------------------------------
# Kernel 2: flash attention — online softmax, causal block skipping (compute
# AND DMA), mask only on diagonal blocks, no per-step casts/scaling.
# ---------------------------------------------------------------------------
def _flash_kernel(q_ref, k_ref, v_ref, o_ref, m_ref, l_ref, acc_ref,
                  *, use_approx_recip):
    qi = pl.program_id(1)
    ki = pl.program_id(2)

    @pl.when(ki == 0)
    def _init():
        m_ref[...] = jnp.full(m_ref.shape, -jnp.inf, jnp.float32)
        l_ref[...] = jnp.zeros(l_ref.shape, jnp.float32)
        acc_ref[...] = jnp.zeros(acc_ref.shape, jnp.float32)

    def _scores():
        # Contract last dims of q and k directly (no explicit k.T).  If the
        # bundle dump ever shows a hidden vxpose here, emit K pre-transposed
        # from the projection kernel instead.
        return jax.lax.dot_general(q_ref[...], k_ref[...],
                                   (((1,), (1,)), ((), ())),
                                   preferred_element_type=jnp.float32)

    def _accumulate(s):
        m_prev = m_ref[...]
        m_new = jnp.maximum(m_prev, jnp.max(s, axis=-1, keepdims=True))
        alpha = jnp.exp(m_prev - m_new)
        p = jnp.exp(s - m_new)
        l_ref[...] = alpha * l_ref[...] + jnp.sum(p, axis=-1, keepdims=True)
        acc_ref[...] = alpha * acc_ref[...] + jnp.dot(
            p.astype(v_ref.dtype), v_ref[...], preferred_element_type=jnp.float32)
        m_ref[...] = m_new

    @pl.when(ki < qi)  # off-diagonal allowed block: no masking VALU work
    def _off_diag():
        _accumulate(_scores())

    @pl.when(ki == qi)  # diagonal block: mask, update, finalize
    def _diag():
        s = _scores()
        tq, tk = s.shape
        row = jax.lax.broadcasted_iota(jnp.int32, (tq, tk), 0)
        col = jax.lax.broadcasted_iota(jnp.int32, (tq, tk), 1)
        s = jnp.where(col <= row, s, _MASK_VALUE)
        _accumulate(s)
        # Last un-skipped kv block for this query block: normalize and write.
        # (Valid because ki is the innermost grid axis and the output block
        # stays resident until qi changes.)
        inv_l = pl.reciprocal(l_ref[...], approx=use_approx_recip)
        o_ref[...] = (acc_ref[...] * inv_l).astype(o_ref.dtype)

    # ki > qi: fully-masked future block.  Compute is skipped above, and the
    # clamped K/V index_maps mean no DMA is issued for these steps either.


def _flash_attention(q, k, v, *, out_dtype, tq, tk, use_approx_recip):
    B, S, Kd = q.shape
    D = v.shape[-1]
    assert tq == tk and S % tq == 0

    kernel = functools.partial(_flash_kernel, use_approx_recip=use_approx_recip)
    # Causal DMA skip: for ki > qi reuse block qi (index unchanged -> no copy).
    kv_index = lambda b, qi, ki: (b, jnp.minimum(ki, qi), 0)

    return pl.pallas_call(
        kernel,
        out_shape=jax.ShapeDtypeStruct((B, S, D), out_dtype),
        grid_spec=pltpu.PrefetchScalarGridSpec(
            num_scalar_prefetch=0,
            grid=(B, S // tq, S // tk),
            in_specs=[
                pl.BlockSpec((None, tq, Kd), lambda b, qi, ki: (b, qi, 0)),
                pl.BlockSpec((None, tk, Kd), kv_index),
                pl.BlockSpec((None, tk, D), kv_index),
            ],
            out_specs=pl.BlockSpec((None, tq, D), lambda b, qi, ki: (b, qi, 0)),
            scratch_shapes=[
                pltpu.VMEM((tq, 1), jnp.float32),  # running max
                pltpu.VMEM((tq, 1), jnp.float32),  # running denominator
                pltpu.VMEM((tq, D), jnp.float32),  # output accumulator
            ],
        ),
        compiler_params=pltpu.CompilerParams(
            # two parallel axes so work shards across both v7x TensorCores
            dimension_semantics=("parallel", "parallel", "arbitrary"),
            vmem_limit_bytes=_VMEM_LIMIT),
    )(q, k, v)


# ---------------------------------------------------------------------------
# Forward pass (matches the PyTorch Attention.forward semantics)
# ---------------------------------------------------------------------------
def attention_forward(x, wq, bq, wk, bk, wv, bv, *,
                      mxu_dtype=jnp.bfloat16, q_block=256, kv_block=256):
    """x: (B, S, D). Linear weights pre-transposed to (in, out); biases (1, out).

    Defaults target v6e/v7x (2x256x256 MXU).  On v5e prefer kv_block=128 while
    keeping q_block large to cut K/V re-reads.
    """
    B, S, D = x.shape
    Kd = wq.shape[1]

    # Fused QKV projection: one x @ [Wq|Wk|Wv] matmul, reduction-tiled weight,
    # bias + 1/sqrt(Kd) scale + dtype cast fused into the epilogue, and three
    # separate q/k/v outputs (no extra HBM slicing pass).
    w_qkv = jnp.concatenate([wq, wk, wv], axis=1)   # (D, 2*Kd + D)
    b_qkv = jnp.concatenate([bq, bk, bv], axis=1)   # (1, 2*Kd + D)
    tr = min(512, S)
    td = min(512, D)
    assert S % tr == 0 and D % td == 0
    scale = 1.0 / math.sqrt(Kd)
    q, k, v = _qkv_projection(x, w_qkv, b_qkv, kd=Kd, scale=scale,
                              out_dtype=mxu_dtype, tr=tr, td=td)

    # For real model sizes Kd/D should be multiples of 128 (lane-dense stores);
    # toy dims inevitably use masked partial stores.
    blk = min(min(q_block, kv_block), S)
    assert S % blk == 0
    use_approx = (mxu_dtype != jnp.float32)  # exact reciprocal on f32 validation path
    return _flash_attention(q, k, v, out_dtype=x.dtype, tq=blk, tk=blk,
                            use_approx_recip=use_approx)


def _reference(x, wq, bq, wk, bk, wv, bv):
    # pure-JAX reference mirroring the PyTorch forward
    Kd = wq.shape[1]
    q = x @ wq + bq
    k = x @ wk + bk
    v = x @ wv + bv
    scores = jnp.einsum('bqd,bkd->bqk', q, k) / math.sqrt(Kd)
    S = x.shape[1]
    mask = jnp.triu(jnp.ones((S, S), dtype=bool), k=1)
    scores = jnp.where(mask[None], -jnp.inf, scores)
    attn = jax.nn.softmax(scores, axis=-1)
    return jnp.einsum('bqk,bkd->bqd', attn, v)


if __name__ == "__main__":
    B, S, D, Kd = 2, 8, 32, 16  # batch, seq_len, model_dimension, key_dimension

    key = jax.random.PRNGKey(0)
    kx, kq, kbq, kk, kbk, kv, kbv = jax.random.split(key, 7)

    x = jax.random.normal(kx, (B, S, D), dtype=jnp.float32)

    # deterministic parameter init (nn.Linear layout, stored pre-transposed as (in, out))
    bound = 1.0 / math.sqrt(D)
    wq = jax.random.uniform(kq, (D, Kd), minval=-bound, maxval=bound, dtype=jnp.float32)
    bq = jax.random.uniform(kbq, (1, Kd), minval=-bound, maxval=bound, dtype=jnp.float32)
    wk = jax.random.uniform(kk, (D, Kd), minval=-bound, maxval=bound, dtype=jnp.float32)
    bk = jax.random.uniform(kbk, (1, Kd), minval=-bound, maxval=bound, dtype=jnp.float32)
    wv = jax.random.uniform(kv, (D, D), minval=-bound, maxval=bound, dtype=jnp.float32)
    bv = jax.random.uniform(kbv, (1, D), minval=-bound, maxval=bound, dtype=jnp.float32)

    ref = _reference(x, wq, bq, wk, bk, wv, bv)

    # f32 path (exact reciprocal): tight structural check of the tiled/online-softmax path
    out_f32 = jax.block_until_ready(
        attention_forward(x, wq, bq, wk, bk, wv, bv, mxu_dtype=jnp.float32))
    assert out_f32.shape == (B, S, D)
    assert jnp.allclose(out_f32, ref, atol=1e-4, rtol=1e-4), "f32 mismatch vs reference"

    # bf16 q/k/v with f32 accumulation: production config for v5e/v6e/v7x
    out_bf16 = jax.block_until_ready(
        attention_forward(x, wq, bq, wk, bk, wv, bv, mxu_dtype=jnp.bfloat16))
    assert out_bf16.shape == (B, S, D)
    assert jnp.allclose(out_bf16, ref, atol=5e-2, rtol=5e-2), "bf16 mismatch vs reference"

    print("KERNEL_OK")
</pallas_src>

<mosaic_0001>
module attributes {stable_mosaic.version = 11 : i64} {
  func.func @_qkv_proj_kernel(%arg0: i32, %arg1: i32, %arg2: i32, %arg3: memref<1x8x32xf32, #tpu.memory_space<vmem>>, %arg4: memref<32x64xf32, #tpu.memory_space<vmem>>, %arg5: memref<1x64xf32, #tpu.memory_space<vmem>>, %arg6: memref<1x8x16xf32, #tpu.memory_space<vmem>>, %arg7: memref<1x8x16xf32, #tpu.memory_space<vmem>>, %arg8: memref<1x8x32xf32, #tpu.memory_space<vmem>>, %arg9: memref<8x64xf32, #tpu.memory_space<vmem>>) attributes {dimension_semantics = [#tpu.dimension_semantics<parallel>, #tpu.dimension_semantics<parallel>, #tpu.dimension_semantics<arbitrary>], iteration_bounds = array<i64: 2, 1, 1>, scalar_prefetch = 0 : i64, scratch_operands = 1 : i64, tpu.core_type = #tpu.core_type<tc>, window_params = [{transform_indices = @transform_0, window_bounds = array<i64: 1, 8, 32>}, {transform_indices = @transform_1, window_bounds = array<i64: 32, 64>}, {pipeline_mode = #tpu.pipeline_mode<synchronous>, transform_indices = @transform_2, window_bounds = array<i64: 1, 64>}, {transform_indices = @transform_3, window_bounds = array<i64: 1, 8, 16>}, {transform_indices = @transform_4, window_bounds = array<i64: 1, 8, 16>}, {transform_indices = @transform_5, window_bounds = array<i64: 1, 8, 32>}]} {
    %c0_i32 = arith.constant 0 : i32
    %0 = arith.cmpi eq, %arg2, %c0_i32 : i32
    %1 = arith.extui %0 : i1 to i32
    %c0_i32_0 = arith.constant 0 : i32
    %2 = arith.cmpi ne, %1, %c0_i32_0 : i32
    scf.if %2 {
      %cst_11 = arith.constant 0.000000e+00 : f32
      %13 = vector.broadcast %cst_11 : f32 to vector<8x64xf32>
      %c0_12 = arith.constant 0 : index
      %c0_13 = arith.constant 0 : index
      %14 = vector.load %arg9[%c0_12, %c0_13] : memref<8x64xf32, #tpu.memory_space<vmem>>, vector<8x64xf32>
      tpu.vector_store %arg9[%c0_12, %c0_13], %13 {strides = array<i32>} : memref<8x64xf32, #tpu.memory_space<vmem>>, vector<8x64xf32>,
    } else {
    }
    %c0 = arith.constant 0 : index
    %c0_1 = arith.constant 0 : index
    %3 = vector.load %arg9[%c0, %c0_1] : memref<8x64xf32, #tpu.memory_space<vmem>>, vector<8x64xf32>
    %c0_2 = arith.constant 0 : index
    %c0_3 = arith.constant 0 : index
    %c0_4 = arith.constant 0 : index
    %4 = vector.load %arg3[%c0_2, %c0_3, %c0_4] : memref<1x8x32xf32, #tpu.memory_space<vmem>>, vector<1x8x32xf32>
    %5 = vector.shape_cast %4 : vector<1x8x32xf32> to vector<8x32xf32>
    %c0_5 = arith.constant 0 : index
    %c0_6 = arith.constant 0 : index
    %6 = vector.load %arg4[%c0_5, %c0_6] : memref<32x64xf32, #tpu.memory_space<vmem>>, vector<32x64xf32>
    %cst = arith.constant dense<0.000000e+00> : vector<8x64xf32>
    %7 = tpu.matmul %5, %6, %cst {dimension_numbers = #tpu.dot_dimension_numbers<[1], [0], [0], [1], [0, 0, 1, 1], [], []>} : vector<8x32xf32>, vector<32x64xf32>, vector<8x64xf32> -> vector<8x64xf32>
    %8 = arith.addf %3, %7 : vector<8x64xf32>
    %c0_7 = arith.constant 0 : index
    %c0_8 = arith.constant 0 : index
    %9 = vector.load %arg9[%c0_7, %c0_8] : memref<8x64xf32, #tpu.memory_space<vmem>>, vector<8x64xf32>
    tpu.vector_store %arg9[%c0_7, %c0_8], %8 {strides = array<i32>} : memref<8x64xf32, #tpu.memory_space<vmem>>, vector<8x64xf32>,
    %c0_i32_9 = arith.constant 0 : i32
    %10 = arith.cmpi eq, %arg2, %c0_i32_9 : i32
    %11 = arith.extui %10 : i1 to i32
    %c0_i32_10 = arith.constant 0 : i32
    %12 = arith.cmpi ne, %11, %c0_i32_10 : i32
    scf.if %12 {
      %c0_11 = arith.constant 0 : index
      %c0_12 = arith.constant 0 : index
      %13 = vector.load %arg9[%c0_11, %c0_12] : memref<8x64xf32, #tpu.memory_space<vmem>>, vector<8x64xf32>
      %c0_13 = arith.constant 0 : index
      %c0_14 = arith.constant 0 : index
      %14 = vector.load %arg5[%c0_13, %c0_14] : memref<1x64xf32, #tpu.memory_space<vmem>>, vector<1x64xf32>
      %15 = vector.broadcast %14 : vector<1x64xf32> to vector<8x64xf32>
      %16 = arith.addf %13, %15 : vector<8x64xf32>
      %17 = vector.extract_strided_slice %16 {offsets = [0, 0], sizes = [8, 16], strides = [1, 1]} : vector<8x64xf32> to vector<8x16xf32>
      %cst_15 = arith.constant 2.500000e-01 : f32
      %18 = vector.broadcast %cst_15 : f32 to vector<8x16xf32>
      %19 = arith.mulf %17, %18 : vector<8x16xf32>
      %c0_16 = arith.constant 0 : index
      %c0_17 = arith.constant 0 : index
      %c0_18 = arith.constant 0 : index
      %20 = vector.load %arg6[%c0_16, %c0_17, %c0_18] : memref<1x8x16xf32, #tpu.memory_space<vmem>>, vector<1x8x16xf32>
      %21 = vector.shape_cast %20 : vector<1x8x16xf32> to vector<8x16xf32>
      %22 = vector.shape_cast %19 : vector<8x16xf32> to vector<1x8x16xf32>
      tpu.vector_store %arg6[%c0_16, %c0_17, %c0_18], %22 {strides = array<i32>} : memref<1x8x16xf32, #tpu.memory_space<vmem>>, vector<1x8x16xf32>,
      %23 = vector.extract_strided_slice %16 {offsets = [0, 16], sizes = [8, 16], strides = [1, 1]} : vector<8x64xf32> to vector<8x16xf32>
      %c0_19 = arith.constant 0 : index
      %c0_20 = arith.constant 0 : index
      %c0_21 = arith.constant 0 : index
      %24 = vector.load %arg7[%c0_19, %c0_20, %c0_21] : memref<1x8x16xf32, #tpu.memory_space<vmem>>, vector<1x8x16xf32>
      %25 = vector.shape_cast %24 : vector<1x8x16xf32> to vector<8x16xf32>
      %26 = vector.shape_cast %23 : vector<8x16xf32> to vector<1x8x16xf32>
      tpu.vector_store %arg7[%c0_19, %c0_20, %c0_21], %26 {strides = array<i32>} : memref<1x8x16xf32, #tpu.memory_space<vmem>>, vector<1x8x16xf32>,
      %27 = vector.extract_strided_slice %16 {offsets = [0, 32], sizes = [8, 32], strides = [1, 1]} : vector<8x64xf32> to vector<8x32xf32>
      %c0_22 = arith.constant 0 : index
      %c0_23 = arith.constant 0 : index
      %c0_24 = arith.constant 0 : index
      %28 = vector.load %arg8[%c0_22, %c0_23, %c0_24] : memref<1x8x32xf32, #tpu.memory_space<vmem>>, vector<1x8x32xf32>
      %29 = vector.shape_cast %28 : vector<1x8x32xf32> to vector<8x32xf32>
      %30 = vector.shape_cast %27 : vector<8x32xf32> to vector<1x8x32xf32>
      tpu.vector_store %arg8[%c0_22, %c0_23, %c0_24], %30 {strides = array<i32>} : memref<1x8x32xf32, #tpu.memory_space<vmem>>, vector<1x8x32xf32>,
    } else {
    }
    return
  }
  func.func @transform_0(%arg0: i32, %arg1: i32, %arg2: i32) -> (i32, i32, i32) {
    %c0_i32 = arith.constant 0 : i32
    return %arg0, %arg1, %arg2 : i32, i32, i32
  }
  func.func @transform_1(%arg0: i32, %arg1: i32, %arg2: i32) -> (i32, i32) {
    %c0_i32 = arith.constant 0 : i32
    %c0_i32_0 = arith.constant 0 : i32
    return %arg2, %c0_i32 : i32, i32
  }
  func.func @transform_2(%arg0: i32, %arg1: i32, %arg2: i32) -> (i32, i32) {
    %c0_i32 = arith.constant 0 : i32
    %c0_i32_0 = arith.constant 0 : i32
    %c0_i32_1 = arith.constant 0 : i32
    return %c0_i32, %c0_i32_0 : i32, i32
  }
  func.func @transform_3(%arg0: i32, %arg1: i32, %arg2: i32) -> (i32, i32, i32) {
    %c0_i32 = arith.constant 0 : i32
    %c0_i32_0 = arith.constant 0 : i32
    return %arg0, %arg1, %c0_i32 : i32, i32, i32
  }
  func.func @transform_4(%arg0: i32, %arg1: i32, %arg2: i32) -> (i32, i32, i32) {
    %c0_i32 = arith.constant 0 : i32
    %c0_i32_0 = arith.constant 0 : i32
    return %arg0, %arg1, %c0_i32 : i32, i32, i32
  }
  func.func @transform_5(%arg0: i32, %arg1: i32, %arg2: i32) -> (i32, i32, i32) {
    %c0_i32 = arith.constant 0 : i32
    %c0_i32_0 = arith.constant 0 : i32
    return %arg0, %arg1, %c0_i32 : i32, i32, i32
  }
}

</mosaic_0001>

<llo_original>
// kernel: tpu_custom_call.1
$region0: #{tpu_custom_call.1}
  #allocation0 [shape = 'u32[]', space=smem, size = 0x4, offset = 0x4, fixed_abs, tag = 'smem constant byte address 0x4 - core index']
  #allocation1 [shape = 'u32[144,128]{1,0:T(1,128)}', space=vmem, size = 0x12000, scoped, tag = 'internal scratch']
  #allocation2 [shape = 'f32[8,64]{1,0:T(8,128)}', space=vmem, size = 0x1000, scoped, tag = 'scratch operand']
  %s0 = inlined_call_operand.hbm [shape: f32[2,8,32], index: 0, kind: input, shape index: {}]
  %s1 = inlined_call_operand.hbm [shape: f32[32,64], index: 1, kind: input, shape index: {}]
  %s2 = inlined_call_operand.vmem [shape: f32[1,64], index: 2, kind: input, shape index: {}]
  %s3 = inlined_call_operand.hbm [shape: f32[2,8,16], index: 3, kind: output, shape index: {0}]
  %s4 = inlined_call_operand.hbm [shape: f32[2,8,16], index: 4, kind: output, shape index: {1}]
  %s5 = inlined_call_operand.hbm [shape: f32[2,8,32], index: 5, kind: output, shape index: {2}]
  %6 = xla_tuple %s3, %s4, %s5
  %s7 = sld [smem:[#allocation0]]
  $region77: #{tpu_custom_call.1} parent=0
    _
  %s9 = ssub.s32 1, %s7
  %s10 = scalar_select 0, %s9, %s7
  $region1: #{tpu_custom_call.1} parent=0
    #allocation3 [shape = 'u8[8192]{0}', space=vmem, size = 0x2000, scoped, tag = 'input window, operand 0']
    #allocation4 [shape = 's32[2]{0}', space=sflag, size = 0x8, scoped, tag = 'scoped memory for tpu_custom_call.1']
    #allocation5 [shape = 's32[2]{0}', space=sflag, size = 0x8, scoped, tag = 'scoped memory for tpu_custom_call.1']
    #allocation6 [shape = 'u8[16384]{0}', space=vmem, size = 0x4000, scoped, tag = 'input window, operand 1, single buffered']
    #allocation7 [shape = 's32[1]{0}', space=sflag, size = 0x4, scoped, tag = 'scoped memory for tpu_custom_call.1']
    #allocation8 [shape = 'u8[8192]{0}', space=vmem, size = 0x2000, scoped, tag = 'output window, operand 0']
    #allocation9 [shape = 'u8[8192]{0}', space=vmem, size = 0x2000, scoped, tag = 'output window, operand 1']
    #allocation10 [shape = 's32[2]{0}', space=sflag, size = 0x8, scoped, tag = 'scoped memory for tpu_custom_call.1']
    #allocation11 [shape = 'u8[8192]{0}', space=vmem, size = 0x2000, scoped, tag = 'output window, operand 2']
    %11 = vsyncpa [#allocation4], 0
    %s12 = scalar_lea.sflag [#allocation4], 1
    %13 = vsyncpa %s12, 0
    %14 = vsyncpa [#allocation7], 0
    %15 = vsyncpa [#allocation5], 0
    %s16 = scalar_lea.sflag [#allocation5], 1
    %17 = vsyncpa %s16, 0
    %18 = vsyncpa [#allocation10], 0
    %s19 = scalar_lea.sflag [#allocation10], 1
    %20 = vsyncpa %s19, 0
    loop: start=0, step=1, limit=4
    $region2: #{tpu_custom_call.1} parent=1 // loop_pre_header
      _
    $region3: #{tpu_custom_call.1} parent=1 // loop_header
      %s22 = sphi 0, %s26
      %p23 = scmp.ge.s32.totalorder %s22, 4
      %s29 = sphi 0, %s48
      %s30 = sphi 0, %s44
      %s31 = sphi 0, %s40
      %s32 = sphi 0, %s29
      %s33 = sphi 0, %s30
      %s34 = sphi 0, %s31
      %s35 = sphi 0, %s32
      %s36 = sphi 0, %s33
      %s37 = sphi 0, %s34
      %s55 = sphi 0, %s57
      %s58 = sphi 0, %s55
      %s59 = sphi 0, %s58
      %s75 = sphi 0, %s59
      %s81 = sphi 0, %s83
      %s84 = sphi 0, %s81
      %s85 = sphi 0, %s84
      %s101 = sphi 0, %s85
      %s105 = sphi 0, %s105
      %s107 = sphi 0, %s105
      %s108 = sphi 0, %s107
      %s122 = sphi 0, %s108
      %s130 = sphi 0, %s132
      %s133 = sphi 0, %s130
      %s134 = sphi 0, %s133
      %s150 = sphi 0, %s134
      %s158 = sphi 0, %s160
      %s161 = sphi 0, %s158
      %s162 = sphi 0, %s161
      %s178 = sphi 0, %s162
      %s186 = sphi 0, %s188
      %s189 = sphi 0, %s186
      %s190 = sphi 0, %s189
      %s206 = sphi 0, %s190
    $region4: #{tpu_custom_call.1} parent=1 // loop_header_branch
      %25 = sbr.rel (%p23) target = $region8
    $region5: #{tpu_custom_call.1} parent=1 // loop_body
      %s27 = ssub.s32 %s22, 1
      %s28 = ssub.s32 %s22, 2
      %s38 = sadd.s32 1, %s31
      %p39 = scmp.ge.s32.totalorder %s38, 1
      %s40 = scalar_select %p39, 0, %s38
      %s41 = sadd.s32 1, %s30
      %s42 = scalar_select %p39, %s41, %s30
      %p43 = scmp.ge.s32.totalorder %s42, 1
      %s44 = scalar_select %p43, 0, %s42
      %s45 = sadd.s32 1, %s29
      %s46 = scalar_select %p43, %s45, %s29
      %p47 = scmp.ge.s32.totalorder %s46, 2
      %s48 = scalar_select %p47, 0, %s46
      %s49 = ssub.s32 %s29, %s48
      %s50 = ssub.s32 %s30, %s44
      %s51 = sor.u32 %s49, %s50
      %s52 = ssub.s32 %s31, %s40
      %s53 = sor.u32 %s51, %s52
      %p54 = scmp.eq.s32.totalorder %s53, 0
      %s56 = sadd.s32 %s55, 1
      %s57 = scalar_select %p54, %s55, %s56
      %p60 = pneg %p54
      %p61 = scmp.eq.s32.totalorder %s22, 1
      %p62 = por %p60, %p61
      %p63 = scmp.ne.s32.totalorder %s55, %s58
      %p64 = scmp.eq.s32.totalorder %s22, 0
      %p65 = por %p63, %p64
      %p66 = scmp.ne.s32.totalorder %s55, %s58
      %p67 = scmp.eq.s32.totalorder %s27, 1
      %p68 = por %p66, %p67
      %p69 = scmp.ne.s32.totalorder %s58, %s59
      %p70 = scmp.eq.s32.totalorder %s27, 0
      %p71 = por %p69, %p70
      %p72 = scmp.ne.s32.totalorder %s58, %s59
      %p73 = scmp.eq.s32.totalorder %s28, 1
      %p74 = por %p72, %p73
      %p76 = scmp.ne.s32.totalorder %s59, %s75
      %p77 = scmp.eq.s32.totalorder %s28, 0
      %p78 = por %p76, %p77
      %s79 = ssub.s32 %s31, %s40
      %p80 = scmp.eq.s32.totalorder %s79, 0
      %s82 = sadd.s32 %s81, 1
      %s83 = scalar_select %p80, %s81, %s82
      %p86 = pneg %p80
      %p87 = scmp.eq.s32.totalorder %s22, 1
      %p88 = por %p86, %p87
      %p89 = scmp.ne.s32.totalorder %s81, %s84
      %p90 = scmp.eq.s32.totalorder %s22, 0
      %p91 = por %p89, %p90
      %p92 = scmp.ne.s32.totalorder %s81, %s84
      %p93 = scmp.eq.s32.totalorder %s27, 1
      %p94 = por %p92, %p93
      %p95 = scmp.ne.s32.totalorder %s84, %s85
      %p96 = scmp.eq.s32.totalorder %s27, 0
      %p97 = por %p95, %p96
      %p98 = scmp.ne.s32.totalorder %s84, %s85
      %p99 = scmp.eq.s32.totalorder %s28, 1
      %p100 = por %p98, %p99
      %p102 = scmp.ne.s32.totalorder %s85, %s101
      %p103 = scmp.eq.s32.totalorder %s28, 0
      %p104 = por %p102, %p103
      %s106 = sadd.s32 %s105, 1
      %p109 = scmp.eq.s32.totalorder %s22, 1
      %p110 = scmp.ne.s32.totalorder %s105, %s107
      %p111 = scmp.eq.s32.totalorder %s22, 0
      %p112 = por %p110, %p111
      %p113 = scmp.ne.s32.totalorder %s105, %s107
      %p114 = scmp.eq.s32.totalorder %s27, 1
      %p115 = por %p113, %p114
      %p116 = scmp.ne.s32.totalorder %s107, %s108
      %p117 = scmp.eq.s32.totalorder %s27, 0
      %p118 = por %p116, %p117
      %p119 = scmp.ne.s32.totalorder %s107, %s108
      %p120 = scmp.eq.s32.totalorder %s28, 1
      %p121 = por %p119, %p120
      %p123 = scmp.ne.s32.totalorder %s108, %s122
      %p124 = scmp.eq.s32.totalorder %s28, 0
      %p125 = por %p123, %p124
      %s126 = ssub.s32 %s29, %s48
      %s127 = ssub.s32 %s30, %s44
      %s128 = sor.u32 %s126, %s127
      %p129 = scmp.eq.s32.totalorder %s128, 0
      %s131 = sadd.s32 %s130, 1
      %s132 = scalar_select %p129, %s130, %s131
      %p135 = pneg %p129
      %p136 = scmp.eq.s32.totalorder %s22, 1
      %p137 = por %p135, %p136
      %p138 = scmp.ne.s32.totalorder %s130, %s133
      %p139 = scmp.eq.s32.totalorder %s22, 0
      %p140 = por %p138, %p139
      %p141 = scmp.ne.s32.totalorder %s130, %s133
      %p142 = scmp.eq.s32.totalorder %s27, 1
      %p143 = por %p141, %p142
      %p144 = scmp.ne.s32.totalorder %s133, %s134
      %p145 = scmp.eq.s32.totalorder %s27, 0
      %p146 = por %p144, %p145
      %p147 = scmp.ne.s32.totalorder %s133, %s134
      %p148 = scmp.eq.s32.totalorder %s28, 1
      %p149 = por %p147, %p148
      %p151 = scmp.ne.s32.totalorder %s134, %s150
      %p152 = scmp.eq.s32.totalorder %s28, 0
      %p153 = por %p151, %p152
      %s154 = ssub.s32 %s29, %s48
      %s155 = ssub.s32 %s30, %s44
      %s156 = sor.u32 %s154, %s155
      %p157 = scmp.eq.s32.totalorder %s156, 0
      %s159 = sadd.s32 %s158, 1
      %s160 = scalar_select %p157, %s158, %s159
      %p163 = pneg %p157
      %p164 = scmp.eq.s32.totalorder %s22, 1
      %p165 = por %p163, %p164
      %p166 = scmp.ne.s32.totalorder %s158, %s161
      %p167 = scmp.eq.s32.totalorder %s22, 0
      %p168 = por %p166, %p167
      %p169 = scmp.ne.s32.totalorder %s158, %s161
      %p170 = scmp.eq.s32.totalorder %s27, 1
      %p171 = por %p169, %p170
      %p172 = scmp.ne.s32.totalorder %s161, %s162
      %p173 = scmp.eq.s32.totalorder %s27, 0
      %p174 = por %p172, %p173
      %p175 = scmp.ne.s32.totalorder %s161, %s162
      %p176 = scmp.eq.s32.totalorder %s28, 1
      %p177 = por %p175, %p176
      %p179 = scmp.ne.s32.totalorder %s162, %s178
      %p180 = scmp.eq.s32.totalorder %s28, 0
      %p181 = por %p179, %p180
      %s182 = ssub.s32 %s29, %s48
      %s183 = ssub.s32 %s30, %s44
      %s184 = sor.u32 %s182, %s183
      %p185 = scmp.eq.s32.totalorder %s184, 0
      %s187 = sadd.s32 %s186, 1
      %s188 = scalar_select %p185, %s186, %s187
      %p191 = pneg %p185
      %p192 = scmp.eq.s32.totalorder %s22, 1
      %p193 = por %p191, %p192
      %p194 = scmp.ne.s32.totalorder %s186, %s189
      %p195 = scmp.eq.s32.totalorder %s22, 0
      %p196 = por %p194, %p195
      %p197 = scmp.ne.s32.totalorder %s186, %s189
      %p198 = scmp.eq.s32.totalorder %s27, 1
      %p199 = por %p197, %p198
      %p200 = scmp.ne.s32.totalorder %s189, %s190
      %p201 = scmp.eq.s32.totalorder %s27, 0
      %p202 = por %p200, %p201
      %p203 = scmp.ne.s32.totalorder %s189, %s190
      %p204 = scmp.eq.s32.totalorder %s28, 1
      %p205 = por %p203, %p204
      %p207 = scmp.ne.s32.totalorder %s190, %s206
      %p208 = scmp.eq.s32.totalorder %s28, 0
      %p209 = por %p207, %p208
      %p210 = scmp.le.s32.totalorder 1, %s22
      %p211 = scmp.lt.s32.totalorder %s22, 3
      %p212 = pnand %p210, %p211
      %p213 = pneg %p212
      // Predicated region
      $region9: #{tpu_custom_call.1} parent=5 // pred_check
        _
      $region10: #{tpu_custom_call.1} parent=5 // pred_check_branch
        %215 = sbr.rel (%p212) target = $region12
      $region11: #{tpu_custom_call.1} parent=5 // pred_region
        %s216 = ssub.s32 %s22, 1
        // Predicated region
        $region13: #{tpu_custom_call.1} parent=11 // pred_check
          %p217 = pneg %p97
        $region14: #{tpu_custom_call.1} parent=11 // pred_check_branch
          %219 = sbr.rel (%p217) target = $region16
        $region15: #{tpu_custom_call.1} parent=11 // pred_region
          %s220 = smul.u32 4, %s34
          %s222 = ssub.s32 512, 512
          %223 = vsyncadd [#allocation7], %s222
          %s224 = smul.addr %s220, 128
          %s225 = scalar_lea.hbm %s1, %s224
          %s226 = sshll.u32 [#allocation6], 4
          %s227 = int_to_ptr.vmem [resolvable:$true] %s226
          %232 = dma.hbm_to_vmem [thread:$0]  %s225, 512, %s227, [#allocation7], 128, 128, 8
        $region16: #{tpu_custom_call.1} parent=11 // pred_fallthru
          _
        // Predicated region
        $region17: #{tpu_custom_call.1} parent=11 // pred_check
          %p233 = pneg %p118
        $region18: #{tpu_custom_call.1} parent=11 // pred_check_branch
          %235 = sbr.rel (%p233) target = $region20
        $region19: #{tpu_custom_call.1} parent=11 // pred_region
          _
        $region20: #{tpu_custom_call.1} parent=11 // pred_fallthru
          _
      $region12: #{tpu_custom_call.1} parent=5 // pred_fallthru
        _
      %p236 = scmp.lt.s32.totalorder %s22, 2
      // Predicated region
      $region21: #{tpu_custom_call.1} parent=5 // pred_check
        %p237 = pneg %p236
      $region22: #{tpu_custom_call.1} parent=5 // pred_check_branch
        %239 = sbr.rel (%p237) target = $region24
      $region23: #{tpu_custom_call.1} parent=5 // pred_region
        // Predicated region
        $region25: #{tpu_custom_call.1} parent=23 // pred_check
          %p240 = pneg %p65
        $region26: #{tpu_custom_call.1} parent=23 // pred_check_branch
          %242 = sbr.rel (%p240) target = $region28
        $region27: #{tpu_custom_call.1} parent=23 // pred_region
          %s243 = sand.u32 %s55, 1
          %s244 = scalar_lea.sflag [#allocation4], %s243
          %s245 = sand.u32 %s55, 1
          %s246 = smul.addr %s245, 8
          %s247 = scalar_lea.vmem [#allocation3], %s246
          %s249 = ssub.s32 128, 128
          %250 = vsyncadd %s244, %s249
          %s251 = sadd.s32 %s31, %s30
          %s252 = sadd.s32 %s251, %s29
          %s253 = smul.addr %s252, 128
          %s254 = scalar_lea.hbm %s0, %s253
          %s256 = sshll.u32 %s247, 4
          %s257 = int_to_ptr.vmem [resolvable:$true] %s256
          %259 = dma.hbm_to_vmem [thread:$0]  %s254, 128, %s257, %s244
        $region28: #{tpu_custom_call.1} parent=23 // pred_fallthru
          _
      $region24: #{tpu_custom_call.1} parent=5 // pred_fallthru
        _
      %p260 = scmp.le.s32.totalorder 1, %s22
      %p261 = scmp.lt.s32.totalorder %s22, 3
      %p262 = pnand %p260, %p261
      %p263 = pneg %p262
      // Predicated region
      $region29: #{tpu_custom_call.1} parent=5 // pred_check
        _
      $region30: #{tpu_custom_call.1} parent=5 // pred_check_branch
        %265 = sbr.rel (%p262) target = $region32
      $region31: #{tpu_custom_call.1} parent=5 // pred_region
        %s266 = ssub.s32 %s22, 1
        %s267 = sand.u32 %s58, 1
        %s268 = scalar_lea.sflag [#allocation4], %s267
        %s269 = sand.u32 %s58, 1
        %s270 = smul.addr %s269, 8
        %s271 = scalar_lea.vmem [#allocation3], %s270
        // Predicated region
        $region33: #{tpu_custom_call.1} parent=31 // pred_check
          %p272 = pneg %p71
        $region34: #{tpu_custom_call.1} parent=31 // pred_check_branch
          %274 = sbr.rel (%p272) target = $region36
        $region35: #{tpu_custom_call.1} parent=31 // pred_region
          %275 = dma.done %s268, 128
        $region36: #{tpu_custom_call.1} parent=31 // pred_fallthru
          _
        // Predicated region
        $region37: #{tpu_custom_call.1} parent=31 // pred_check
          %p276 = pneg %p97
        $region38: #{tpu_custom_call.1} parent=31 // pred_check_branch
          %278 = sbr.rel (%p276) target = $region40
        $region39: #{tpu_custom_call.1} parent=31 // pred_region
          %279 = dma.done [#allocation7], 512
        $region40: #{tpu_custom_call.1} parent=31 // pred_fallthru
          _
        %s280 = sand.u32 %s58, 1
        %s281 = scalar_lea.sflag [#allocation4], %s280
        %s282 = sand.u32 %s58, 1
        %s283 = smul.addr %s282, 8
        %s284 = scalar_lea.vmem [#allocation3], %s283
        %p285 = pneg %p71
        %p286 = pneg %p68
        %p287 = pneg %p97
        %p288 = pneg %p94
        %p289 = pneg %p118
        %p290 = pneg %p115
        %p291 = pneg %p146
        %p292 = pneg %p143
        %s293 = sand.u32 %s133, 1
        %s294 = scalar_lea.sflag [#allocation5], %s293
        %s295 = sand.u32 %s133, 1
        %s296 = smul.addr %s295, 8
        %s297 = scalar_lea.vmem [#allocation8], %s296
        %p298 = pneg %p174
        %p299 = pneg %p171
        %s300 = sand.u32 %s27, 1
        %s301 = scalar_lea.sflag [#allocation10], %s300
        %s302 = sand.u32 %s161, 1
        %s303 = smul.addr %s302, 8
        %s304 = scalar_lea.vmem [#allocation9], %s303
        %p305 = pneg %p202
        %p306 = pneg %p199
        %s307 = sand.u32 %s27, 1
        %s308 = scalar_lea.sflag [#allocation10], %s307
        %s309 = sand.u32 %s189, 1
        %s310 = smul.addr %s309, 8
        %s311 = scalar_lea.vmem [#allocation11], %s310
        %s312 = smul.u32 4, %s34
        %p313 = scmp.eq.s32.totalorder %s34, 0
        // Predicated region
        $region41: #{tpu_custom_call.1} parent=31 // pred_check
          %p314 = pneg %p313
        $region42: #{tpu_custom_call.1} parent=31 // pred_check_branch
          %316 = sbr.rel (%p314) target = $region44
        $region43: #{tpu_custom_call.1} parent=31 // pred_region
          %vm317 = vcmask 523264
          %318 = vst.msk [vmem:[#allocation2] sm:$0xff] %vm317, 0.0
        $region44: #{tpu_custom_call.1} parent=31 // pred_fallthru
          _
        %v319 = vld [vmem:[#allocation2] sm:$0xff]
        %v320 = vld [vmem:[%s271] sm:$0xff]
        %v321 = vld [vmem:[#allocation6] sm:$0xff]
        %v322 = vld [vmem:[#allocation6 + $0x8] sm:$0xff]
        %v323 = vld [vmem:[#allocation6 + $0x10] sm:$0xff]
        %v324 = vld [vmem:[#allocation6 + $0x18] sm:$0xff]
        %vm325 = vcmask 261120
        %v327 = vsel %vm325, %v320, 0
        %329 = vmatprep.subr.mxu0 0.0
        %330 = vmatpush1.msra.mxu0 %v321
        %331 = vmatprep.subr.mxu0 0.0
        %332 = vmatpush1.msra.mxu0 %v322
        %333 = vmatprep.subr.mxu0 0.0
        %334 = vmatpush1.msra.mxu0 %v323
        %335 = vmatprep.subr.mxu0 0.0
        %336 = vmatpush1.msra.mxu0 %v324
        %337 = vmatprep.subr.mxu0 0.0
        %338 = vmatpush1.msra.mxu0 0.0
        %339 = vmatprep.subr.mxu0 0.0
        %340 = vmatpush1.msra.mxu0 0.0
        %341 = vmatprep.subr.mxu0 0.0
        %342 = vmatpush1.msra.mxu0 0.0
        %343 = vmatprep.subr.mxu0 0.0
        %344 = vmatpush1.msra.mxu0 0.0
        %345 = vmatprep.subr.mxu0 0.0
        %346 = vmatpush1.msra.mxu0 0.0
        %347 = vmatprep.subr.mxu0 0.0
        %348 = vmatpush1.msra.mxu0 0.0
        %349 = vmatprep.subr.mxu0 0.0
        %350 = vmatpush1.msra.mxu0 0.0
        %351 = vmatprep.subr.mxu0 0.0
        %352 = vmatpush1.msra.mxu0 0.0
        %353 = vmatprep.subr.mxu0 0.0
        %354 = vmatpush1.msra.mxu0 0.0
        %355 = vmatprep.subr.mxu0 0.0
        %356 = vmatpush1.msra.mxu0 0.0
        %357 = vmatprep.subr.mxu0 0.0
        %358 = vmatpush1.msra.mxu0 0.0
        %359 = vmatprep.subr.mxu0 0.0
        %360 = vmatpush1.msra.mxu0 0.0
        %361 = vmatprep.subr.mxu0 0.0
        %362 = vmatpush1.msra.mxu0 0.0
        %363 = vmatprep.subr.mxu0 0.0
        %364 = vmatpush1.msra.mxu0 0.0
        %365 = vmatprep.subr.mxu0 0.0
        %366 = vmatpush1.msra.mxu0 0.0
        %367 = vmatprep.subr.mxu0 0.0
        %368 = vmatpush1.msra.mxu0 0.0
        %369 = vmatprep.subr.mxu0 0.0
        %370 = vmatpush1.msra.mxu0 0.0
        %371 = vmatprep.subr.mxu0 0.0
        %372 = vmatpush1.msra.mxu0 0.0
        %373 = vmatprep.subr.mxu0 0.0
        %374 = vmatpush1.msra.mxu0 0.0
        %375 = vmatprep.subr.mxu0 0.0
        %376 = vmatpush1.msra.mxu0 0.0
        %377 = vmatprep.subr.mxu0 0.0
        %378 = vmatpush1.msra.mxu0 0.0
        %379 = vmatprep.subr.mxu0 0.0
        %380 = vmatpush1.msra.mxu0 0.0
        %381 = vmatprep.subr.mxu0 0.0
        %382 = vmatpush1.msra.mxu0 0.0
        %383 = vmatprep.subr.mxu0 0.0
        %384 = vmatpush1.msra.mxu0 0.0
        %385 = vmatprep.subr.mxu0 0.0
        %386 = vmatpush1.msra.mxu0 0.0
        %387 = vmatprep.subr.mxu0 0.0
        %388 = vmatpush1.msra.mxu0 0.0
        %389 = vmatprep.subr.mxu0 0.0
        %390 = vmatpush1.msra.mxu0 0.0
        %391 = vmatprep.subr.mxu0 0.0
        %392 = vmatpush1.msra.mxu0 0.0
        %393 = vmatprep.mubr.f32.mxu0 0.0
        %394 = vmatmul.mubr.f32.gmra.mrb[0].mxu0 %v327
        %v395 = vpop.f32.mrb[0].mxu0
        %v396 = vadd.f32 0.0, %v395
        %v397 = vpop.f32.mrb[0].mxu0
        %398 = vdwg.mxu0
        %v399 = vadd.f32 %v319, %v396
        %vm400 = vcmask 523264
        %401 = vst.msk [vmem:[#allocation2] sm:$0xff] %vm400, %v399
        // Predicated region
        $region45: #{tpu_custom_call.1} parent=31 // pred_check
          %p402 = pneg %p313
        $region46: #{tpu_custom_call.1} parent=31 // pred_check_branch
          %404 = sbr.rel (%p402) target = $region48
        $region47: #{tpu_custom_call.1} parent=31 // pred_region
          %v405 = vld [vmem:[#allocation2] sm:$0xff]
          %v406 = vld [vmem:[%s2] sm:$0x1]
          %v408 = vlaneseq
          %v409 = vshrl.u32 %v408, 7
          %v410 = vsub.s32 0, %v409
          %v411 = vrot.slane %v406, %v410
          %v413 = vadd.f32 %v405, %v411
          %v414 = vmul.f32 %v413, 0.25
          %vm415 = vcmask 130048
          %416 = vst.msk [vmem:[%s297] sm:$0xff] %vm415, %v414
          %418 = vrot.lane.b32.xlu0 %v413, 112
          %v419 = vpop.permute.xlu0 %418
          %421 = vst.msk [vmem:[%s304] sm:$0xff] %vm415, %v419
          %422 = vrot.lane.b32.xlu0 %v413, 96
          %v423 = vpop.permute.xlu0 %422
          %425 = vst.msk [vmem:[%s311] sm:$0xff] %vm325, %v423
        $region48: #{tpu_custom_call.1} parent=31 // pred_fallthru
          _
        %s426 = sand.u32 %s133, 1
        %s427 = scalar_lea.sflag [#allocation5], %s426
        %s428 = sand.u32 %s133, 1
        %s429 = smul.addr %s428, 8
        %s430 = scalar_lea.vmem [#allocation8], %s429
        %s431 = sand.u32 %s27, 1
        %s432 = scalar_lea.sflag [#allocation10], %s431
        %s433 = sand.u32 %s161, 1
        %s434 = smul.addr %s433, 8
        %s435 = scalar_lea.vmem [#allocation9], %s434
        %s436 = sand.u32 %s27, 1
        %s437 = scalar_lea.sflag [#allocation10], %s436
        %s438 = sand.u32 %s189, 1
        %s439 = smul.addr %s438, 8
        %s440 = scalar_lea.vmem [#allocation11], %s439
        // Predicated region
        $region49: #{tpu_custom_call.1} parent=31 // pred_check
          %p441 = pneg %p143
        $region50: #{tpu_custom_call.1} parent=31 // pred_check_branch
          %443 = sbr.rel (%p441) target = $region52
        $region51: #{tpu_custom_call.1} parent=31 // pred_region
          %s445 = ssub.s32 128, 128
          %446 = vsyncadd %s427, %s445
          %s447 = sadd.s32 %s33, %s32
          %s448 = smul.addr %s447, 128
          %s449 = scalar_lea.hbm %s3, %s448
          %s451 = sshll.u32 %s430, 4
          %s452 = int_to_ptr.vmem [resolvable:$true] %s451
          %454 = dma.vmem_to_hbm [thread:$0]  %s452, 128, %s449, %s427
        $region52: #{tpu_custom_call.1} parent=31 // pred_fallthru
          _
        // Predicated region
        $region53: #{tpu_custom_call.1} parent=31 // pred_check
          %p455 = pneg %p171
        $region54: #{tpu_custom_call.1} parent=31 // pred_check_branch
          %457 = sbr.rel (%p455) target = $region56
        $region55: #{tpu_custom_call.1} parent=31 // pred_region
          %s459 = ssub.s32 128, 128
          %460 = vsyncadd %s432, %s459
          %s461 = sadd.s32 %s33, %s32
          %s462 = smul.addr %s461, 128
          %s463 = scalar_lea.hbm %s4, %s462
          %s465 = sshll.u32 %s435, 4
          %s466 = int_to_ptr.vmem [resolvable:$true] %s465
          %468 = dma.vmem_to_hbm [thread:$0]  %s466, 128, %s463, %s432
        $region56: #{tpu_custom_call.1} parent=31 // pred_fallthru
          _
        // Predicated region
        $region57: #{tpu_custom_call.1} parent=31 // pred_check
          %p469 = pneg %p199
        $region58: #{tpu_custom_call.1} parent=31 // pred_check_branch
          %471 = sbr.rel (%p469) target = $region60
        $region59: #{tpu_custom_call.1} parent=31 // pred_region
          %s473 = ssub.s32 128, 128
          %474 = vsyncadd %s437, %s473
          %s475 = sadd.s32 %s33, %s32
          %s476 = smul.addr %s475, 128
          %s477 = scalar_lea.hbm %s5, %s476
          %s479 = sshll.u32 %s440, 4
          %s480 = int_to_ptr.vmem [resolvable:$true] %s479
          %482 = dma.vmem_to_hbm [thread:$0]  %s480, 128, %s477, %s437
        $region60: #{tpu_custom_call.1} parent=31 // pred_fallthru
          _
      $region32: #{tpu_custom_call.1} parent=5 // pred_fallthru
        _
      %p483 = scmp.le.s32.totalorder 2, %s22
      // Predicated region
      $region61: #{tpu_custom_call.1} parent=5 // pred_check
        %p484 = pneg %p483
      $region62: #{tpu_custom_call.1} parent=5 // pred_check_branch
        %486 = sbr.rel (%p484) target = $region64
      $region63: #{tpu_custom_call.1} parent=5 // pred_region
        %s487 = ssub.s32 %s22, 2
        // Predicated region
        $region65: #{tpu_custom_call.1} parent=63 // pred_check
          %p488 = pneg %p149
        $region66: #{tpu_custom_call.1} parent=63 // pred_check_branch
          %490 = sbr.rel (%p488) target = $region68
        $region67: #{tpu_custom_call.1} parent=63 // pred_region
          %s491 = sand.u32 %s134, 1
          %s492 = scalar_lea.sflag [#allocation5], %s491
          %s493 = sand.u32 %s134, 1
          %s494 = smul.addr %s493, 8
          %s495 = scalar_lea.vmem [#allocation8], %s494
          %496 = dma.done %s492, 128
        $region68: #{tpu_custom_call.1} parent=63 // pred_fallthru
          _
        // Predicated region
        $region69: #{tpu_custom_call.1} parent=63 // pred_check
          %p497 = pneg %p177
        $region70: #{tpu_custom_call.1} parent=63 // pred_check_branch
          %499 = sbr.rel (%p497) target = $region72
        $region71: #{tpu_custom_call.1} parent=63 // pred_region
          %s500 = sand.u32 %s28, 1
          %s501 = scalar_lea.sflag [#allocation10], %s500
          %s502 = sand.u32 %s162, 1
          %s503 = smul.addr %s502, 8
          %s504 = scalar_lea.vmem [#allocation9], %s503
          %505 = dma.done %s501, 128
        $region72: #{tpu_custom_call.1} parent=63 // pred_fallthru
          _
        // Predicated region
        $region73: #{tpu_custom_call.1} parent=63 // pred_check
          %p506 = pneg %p205
        $region74: #{tpu_custom_call.1} parent=63 // pred_check_branch
          %508 = sbr.rel (%p506) target = $region76
        $region75: #{tpu_custom_call.1} parent=63 // pred_region
          %s509 = sand.u32 %s28, 1
          %s510 = scalar_lea.sflag [#allocation10], %s509
          %s511 = sand.u32 %s190, 1
          %s512 = smul.addr %s511, 8
          %s513 = scalar_lea.vmem [#allocation11], %s512
          %514 = dma.done %s510, 128
        $region76: #{tpu_custom_call.1} parent=63 // pred_fallthru
          _
      $region64: #{tpu_custom_call.1} parent=5 // pred_fallthru
        _
    $region6: #{tpu_custom_call.1} parent=1 // loop_footer
      %s26 = sadd.s32 1, %s22
    $region7: #{tpu_custom_call.1} parent=1 // loop_footer_branch
      %21 = sbr.rel target = $region3
    $region8: #{tpu_custom_call.1} parent=1 // loop_exit
      _
    %515 = vsyncpa [#allocation4], 1
    %s516 = scalar_lea.sflag [#allocation4], 1
    %517 = vsyncpa %s516, 1
    %518 = vsyncpa [#allocation7], 1
    %519 = vsyncpa [#allocation5], 1
    %s520 = scalar_lea.sflag [#allocation5], 1
    %521 = vsyncpa %s520, 1
    %522 = vsyncpa [#allocation10], 1
    %s523 = scalar_lea.sflag [#allocation10], 1
    %524 = vsyncpa %s523, 1

</llo_original>
